<compile_context>
chip_gen: v7x
topology: tpu7x:2x2x1
jax: 0.10.0
libtpu: 0.0.40
codegen_flags: <defaults>
</compile_context>

<pallas_src>
import math
import functools

import jax
import jax.numpy as jnp
from jax.experimental import pallas as pl
from jax.experimental.pallas import tpu as pltpu


def _attn_pool_kernel(x_ref, mask_ref, wa_ref, h_ref, *, hidden_size):
    # x_ref   : (TB, S, H)  batch tile of hidden states (f32 or bf16)
    # mask_ref: (TB, S, 1)  additive mask, f32, S on sublanes
    # wa_ref  : (1, H)      nn.Linear(H, 1, bias=False).weight, f32
    # h_ref   : (TB, H)     pooled output, f32 (classifier applied outside)
    x = x_ref[...]                                          # (TB, S, H)
    wa = wa_ref[...]                                        # (1, H), f32

    # Scaled dot scores: lane-reduce over H, keepdims -> (TB, S, 1) so that S
    # stays on sublanes (matches the mask layout; no transpose of p later).
    # bf16 x is promoted to f32 by the f32 weight -> f32 accumulation.
    scores = jnp.sum(x * wa[None, :, :], axis=-1, keepdims=True)   # (TB,S,1) f32
    scores = scores * (1.0 / math.sqrt(hidden_size)) + mask_ref[...]

    # Numerically-stable softmax over the sequence (sublane) axis.
    scores = scores - jnp.max(scores, axis=1, keepdims=True)
    e = jnp.exp(scores)                                     # (TB, S, 1)
    denom = jnp.sum(e, axis=1, keepdims=True)               # (TB, 1, 1)
    p = e * pl.reciprocal(denom, approx=True)               # EUP vrcp, ~free

    # Attention-weighted pooling: p (S on sublanes) broadcasts across H lanes
    # of x, then sublane-reduce over S.  f32 accumulation even for bf16 x.
    h = jnp.sum(p * x, axis=1)                              # (TB, H) f32

    # TODO(synk): nn.Dropout(p=0.5) is identity in inference mode; training-mode
    # dropout would need pltpu.prng_* and is intentionally not implemented.
    # TODO(synk): if the bundle dump shows the (TB,S,H) elementwise temporaries
    # materializing in VMEM, restructure as lax.fori_loop(unroll=True) over S
    # sub-chunks accumulating scores and h (VMEM budget below already reserves
    # headroom for one f32 temporary).
    h_ref[...] = h.astype(h_ref.dtype)


def _vmem_capacity_bytes():
    """Physical VMEM per TensorCore for the current generation."""
    try:
        return int(pltpu.get_tpu_info().vmem_capacity_bytes)
    except Exception:
        return 64 << 20   # conservative default (v7x per-TC VMEM)


def _block_footprint(tb, S, H, itemsize):
    """Worst-case VMEM bytes for one grid step: double-buffered blocks plus
    headroom for one full-block f32 elementwise temporary."""
    x_blk = tb * S * H * itemsize
    mask_blk = tb * S * 4
    out_blk = tb * H * 4
    f32_tmp = tb * S * H * 4
    return 2 * (x_blk + mask_blk + out_blk) + f32_tmp


def _pick_batch_tile(B, S, H, itemsize, vmem_bytes):
    """8-aligned batch tile sized from the generation's VMEM, preferring a grid
    of >= 4 steps (>= 2 per TensorCore on dual-TC chips)."""
    if B <= 8:
        return B                                    # single full-dim block
    budget = min(vmem_bytes // 2, 48 << 20)
    max_tb = ((B + 7) // 8) * 8
    tb = 8
    while tb + 8 <= max_tb and _block_footprint(tb + 8, S, H, itemsize) <= budget:
        tb += 8
    # Prefer >= 4 grid steps so the software pipeline overlaps DMA and compute
    # on every core (and both v7x TensorCores get multiple steps).
    tb_steps = max(8, ((B // 4) // 8) * 8)
    return max(8, min(tb, tb_steps))


def _xla_forward(output, mask, w_attn, w_fc, b_fc):
    """Pure-XLA path for tiny / narrow problems (and the numerical reference)."""
    x = output.astype(jnp.float32)
    H = x.shape[-1]
    attn = jnp.einsum("bsh,oh->bso", x, w_attn.astype(jnp.float32))[..., 0]
    attn = jax.nn.softmax(attn / math.sqrt(H) + mask.astype(jnp.float32), axis=1)
    h = jnp.einsum("bsh,bs->bh", x, attn)
    return h @ w_fc.astype(jnp.float32).T + b_fc.astype(jnp.float32)


def dot_attention(output, mask, w_attn, w_fc, b_fc, *, force_pallas=False):
    """Pallas attention pooling + XLA classifier.

    output: (B, S, H) f32 or bf16, mask: (B, S) additive mask,
    w_attn: (1, H), w_fc: (num_out, H), b_fc: (num_out,).
    """
    B, S, H = output.shape
    itemsize = jnp.dtype(output.dtype).itemsize

    # Fast path: narrow hidden (H < 128 -> lanes underutilized) or a problem so
    # small that the pallas_call fixed cost dominates -> plain XLA.
    tiny = (H < 128) or (B * S * H * itemsize < (256 << 10))
    if tiny and not force_pallas:
        return _xla_forward(output, mask, w_attn, w_fc, b_fc)

    vmem_bytes = _vmem_capacity_bytes()
    vmem_limit = min(vmem_bytes * 3 // 4, 64 << 20)
    tb = _pick_batch_tile(B, S, H, itemsize, vmem_bytes)

    if _block_footprint(tb, S, H, itemsize) > vmem_limit:
        # TODO(synk): S*H too large for a full-sequence block even at tb=8;
        # an online-softmax S-tiled variant is not implemented — use XLA.
        return _xla_forward(output, mask, w_attn, w_fc, b_fc)

    grid = (pl.cdiv(B, tb),)
    mask3 = mask.astype(jnp.float32).reshape(B, S, 1)   # S on sublanes in-kernel
    wa = w_attn.astype(jnp.float32)

    cost = pl.CostEstimate(
        flops=4 * B * S * H,                      # scores mul+add, pooling mul+add
        transcendentals=B * S,                    # exp in the softmax
        bytes_accessed=B * S * H * itemsize + B * S * 4 + B * H * 4 + H * 4,
    )

    kernel = functools.partial(_attn_pool_kernel, hidden_size=H)

    # TODO(synk): on v7x, if the xprof trace shows exposed DMA at this block
    # size, add pipeline_mode=pl.Buffered(3) to the input BlockSpec.
    h = pl.pallas_call(
        kernel,
        out_shape=jax.ShapeDtypeStruct((B, H), jnp.float32),
        grid_spec=pltpu.PrefetchScalarGridSpec(
            num_scalar_prefetch=0,
            grid=grid,
            in_specs=[
                pl.BlockSpec((tb, S, H), lambda b: (b, 0, 0)),   # hidden states
                pl.BlockSpec((tb, S, 1), lambda b: (b, 0, 0)),   # additive mask
                pl.BlockSpec((1, H), lambda b: (0, 0)),          # attn weight
            ],
            out_specs=pl.BlockSpec((tb, H), lambda b: (b, 0)),   # pooled h
        ),
        compiler_params=pltpu.CompilerParams(
            dimension_semantics=("parallel",),
            vmem_limit_bytes=int(vmem_limit),
        ),
        cost_estimate=cost,
    )(output, mask3, wa)

    # Classifier hoisted out of the kernel: one lane-efficient (B,H)@(H,num_out).
    return h @ w_fc.astype(jnp.float32).T + b_fc.astype(jnp.float32)


def dot_attention_ref(output, mask, w_attn, w_fc, b_fc):
    """Pure-JAX reference mirroring the PyTorch forward (eval mode)."""
    return _xla_forward(output, mask, w_attn, w_fc, b_fc)


if __name__ == "__main__":
    B, S, H, NUM_OUT = 2, 8, 32, 2

    key = jax.random.PRNGKey(0)
    k_out, k_wa, k_wf, k_bf = jax.random.split(key, 4)

    output = jax.random.normal(k_out, (B, S, H), dtype=jnp.float32)
    # Additive mask: last 2 positions of batch 1 masked out.
    mask = jnp.zeros((B, S), dtype=jnp.float32)
    mask = mask.at[1, -2:].set(-1e9)

    # Deterministic parameter init (shapes from nn.Linear in __init__).
    w_attn = jax.random.normal(k_wa, (1, H), dtype=jnp.float32) * 0.1
    w_fc = jax.random.normal(k_wf, (NUM_OUT, H), dtype=jnp.float32) * 0.1
    b_fc = jax.random.normal(k_bf, (NUM_OUT,), dtype=jnp.float32) * 0.1

    y_ref = dot_attention_ref(output, mask, w_attn, w_fc, b_fc)

    # 1) f32 streaming path through the Pallas kernel (forced on: the demo
    #    shapes are below the XLA fast-path threshold).
    y = jax.block_until_ready(
        dot_attention(output, mask, w_attn, w_fc, b_fc, force_pallas=True))
    assert y.shape == (B, NUM_OUT)
    # Tolerance loosened slightly for pl.reciprocal(approx=True) in the softmax.
    assert jnp.allclose(y, y_ref, atol=2e-3, rtol=2e-3), (y, y_ref)

    # 2) bf16 streaming path (f32 stats/accumulation inside the kernel).
    out_bf16 = output.astype(jnp.bfloat16)
    y_bf = jax.block_until_ready(
        dot_attention(out_bf16, mask, w_attn, w_fc, b_fc, force_pallas=True))
    y_bf_ref = dot_attention_ref(out_bf16.astype(jnp.float32), mask, w_attn, w_fc, b_fc)
    assert jnp.allclose(y_bf, y_bf_ref, atol=2e-3, rtol=2e-3), (y_bf, y_bf_ref)

    # 3) Tiny-shape fast path (pure XLA) sanity check.
    y_fast = jax.block_until_ready(dot_attention(output, mask, w_attn, w_fc, b_fc))
    assert jnp.allclose(y_fast, y_ref, atol=1e-5, rtol=1e-5), (y_fast, y_ref)

    print("KERNEL_OK")
</pallas_src>

<mosaic_0001>
module attributes {stable_mosaic.version = 11 : i64} {
  func.func @_attn_pool_kernel(%arg0: i32, %arg1: memref<2x8x32xf32, #tpu.memory_space<vmem>>, %arg2: memref<2x8x1xf32, #tpu.memory_space<vmem>>, %arg3: memref<1x32xf32, #tpu.memory_space<vmem>>, %arg4: memref<2x32xf32, #tpu.memory_space<vmem>>) attributes {dimension_semantics = [#tpu.dimension_semantics<parallel>], iteration_bounds = array<i64: 1>, scalar_prefetch = 0 : i64, scratch_operands = 0 : i64, tpu.core_type = #tpu.core_type<tc>, window_params = [{transform_indices = @transform_0, window_bounds = array<i64: 2, 8, 32>}, {transform_indices = @transform_1, window_bounds = array<i64: 2, 8, 1>}, {pipeline_mode = #tpu.pipeline_mode<synchronous>, transform_indices = @transform_2, window_bounds = array<i64: 1, 32>}, {transform_indices = @transform_3, window_bounds = array<i64: 2, 32>}]} {
    %c0 = arith.constant 0 : index
    %c0_0 = arith.constant 0 : index
    %c0_1 = arith.constant 0 : index
    %0 = vector.load %arg1[%c0, %c0_0, %c0_1] : memref<2x8x32xf32, #tpu.memory_space<vmem>>, vector<2x8x32xf32>
    %c0_2 = arith.constant 0 : index
    %c0_3 = arith.constant 0 : index
    %1 = vector.load %arg3[%c0_2, %c0_3] : memref<1x32xf32, #tpu.memory_space<vmem>>, vector<1x32xf32>
    %2 = vector.shape_cast %1 : vector<1x32xf32> to vector<1x1x32xf32>
    %3 = vector.broadcast %2 : vector<1x1x32xf32> to vector<2x8x32xf32>
    %4 = arith.mulf %0, %3 : vector<2x8x32xf32>
    %cst = arith.constant dense<0.000000e+00> : vector<2x8xf32>
    %5 = vector.multi_reduction <add>, %4, %cst [2] : vector<2x8x32xf32> to vector<2x8xf32>
    %6 = vector.shape_cast %5 : vector<2x8xf32> to vector<2x8x1xf32>
    %cst_4 = arith.constant 0.176776692 : f32
    %7 = vector.broadcast %cst_4 : f32 to vector<2x8x1xf32>
    %8 = arith.mulf %6, %7 : vector<2x8x1xf32>
    %c0_5 = arith.constant 0 : index
    %c0_6 = arith.constant 0 : index
    %c0_7 = arith.constant 0 : index
    %9 = vector.load %arg2[%c0_5, %c0_6, %c0_7] : memref<2x8x1xf32, #tpu.memory_space<vmem>>, vector<2x8x1xf32>
    %10 = arith.addf %8, %9 : vector<2x8x1xf32>
    %cst_8 = arith.constant dense<0xFF800000> : vector<2x1xf32>
    %11 = vector.multi_reduction <maximumf>, %10, %cst_8 [1] : vector<2x8x1xf32> to vector<2x1xf32>
    %12 = vector.shape_cast %11 : vector<2x1xf32> to vector<2x1x1xf32>
    %13 = vector.broadcast %12 : vector<2x1x1xf32> to vector<2x8x1xf32>
    %14 = arith.subf %10, %13 : vector<2x8x1xf32>
    %15 = math.exp %14 : vector<2x8x1xf32>
    %cst_9 = arith.constant dense<0.000000e+00> : vector<2x1xf32>
    %16 = vector.multi_reduction <add>, %15, %cst_9 [1] : vector<2x8x1xf32> to vector<2x1xf32>
    %17 = vector.shape_cast %16 : vector<2x1xf32> to vector<2x1x1xf32>
    %18 = tpu.reciprocal %17 {approx = true} : vector<2x1x1xf32> -> vector<2x1x1xf32>
    %19 = vector.broadcast %18 : vector<2x1x1xf32> to vector<2x8x1xf32>
    %20 = arith.mulf %15, %19 : vector<2x8x1xf32>
    %21 = vector.broadcast %20 : vector<2x8x1xf32> to vector<2x8x32xf32>
    %22 = arith.mulf %21, %0 : vector<2x8x32xf32>
    %cst_10 = arith.constant dense<0.000000e+00> : vector<2x32xf32>
    %23 = vector.multi_reduction <add>, %22, %cst_10 [1] : vector<2x8x32xf32> to vector<2x32xf32>
    %c0_11 = arith.constant 0 : index
    %c0_12 = arith.constant 0 : index
    %24 = vector.load %arg4[%c0_11, %c0_12] : memref<2x32xf32, #tpu.memory_space<vmem>>, vector<2x32xf32>
    tpu.vector_store %arg4[%c0_11, %c0_12], %23 {strides = array<i32>} : memref<2x32xf32, #tpu.memory_space<vmem>>, vector<2x32xf32>,
    return
  }
  func.func @transform_0(%arg0: i32) -> (i32, i32, i32) {
    %c0_i32 = arith.constant 0 : i32
    %c0_i32_0 = arith.constant 0 : i32
    %c0_i32_1 = arith.constant 0 : i32
    return %arg0, %c0_i32, %c0_i32_0 : i32, i32, i32
  }
  func.func @transform_1(%arg0: i32) -> (i32, i32, i32) {
    %c0_i32 = arith.constant 0 : i32
    %c0_i32_0 = arith.constant 0 : i32
    %c0_i32_1 = arith.constant 0 : i32
    return %arg0, %c0_i32, %c0_i32_0 : i32, i32, i32
  }
  func.func @transform_2(%arg0: i32) -> (i32, i32) {
    %c0_i32 = arith.constant 0 : i32
    %c0_i32_0 = arith.constant 0 : i32
    %c0_i32_1 = arith.constant 0 : i32
    return %c0_i32, %c0_i32_0 : i32, i32
  }
  func.func @transform_3(%arg0: i32) -> (i32, i32) {
    %c0_i32 = arith.constant 0 : i32
    %c0_i32_0 = arith.constant 0 : i32
    return %arg0, %c0_i32 : i32, i32
  }
}

</mosaic_0001>

<llo_original>
// kernel: tpu_custom_call.1
$region0: #{tpu_custom_call.1}
  #allocation0 [shape = 'u32[]', space=smem, size = 0x4, offset = 0x4, fixed_abs, tag = 'smem constant byte address 0x4 - core index']
  #allocation1 [shape = 'u32[144,128]{1,0:T(1,128)}', space=vmem, size = 0x12000, scoped, tag = 'internal scratch']
  %s0 = inlined_call_operand.vmem [shape: f32[2,8,32], index: 0, kind: input, shape index: {}]
  %s1 = inlined_call_operand.vmem [shape: f32[2,8,1], index: 1, kind: input, shape index: {}]
  %s2 = inlined_call_operand.vmem [shape: f32[1,32], index: 2, kind: input, shape index: {}]
  %s3 = inlined_call_operand.hbm [shape: f32[2,32], index: 3, kind: output, shape index: {}]
  %s4 = sld [smem:[#allocation0]]
  $region22: #{tpu_custom_call.1} parent=0
    _
  %s6 = ssub.s32 1, %s4
  %s7 = scalar_select 0, %s6, %s4
  $region1: #{tpu_custom_call.1} parent=0
    #allocation2 [shape = 'u8[1024]{0}', space=vmem, size = 0x400, scoped, tag = 'output window, operand 0, single buffered']
    #allocation3 [shape = 's32[1]{0}', space=sflag, size = 0x4, scoped, tag = 'scoped memory for tpu_custom_call.1']
    %8 = vsyncpa [#allocation3], 0
    // Predicated region
    $region2: #{tpu_custom_call.1} parent=1 // pred_check
      _
    $region3: #{tpu_custom_call.1} parent=1 // pred_check_branch
      %10 = sbr.rel (0) target = $region5
    $region4: #{tpu_custom_call.1} parent=1 // pred_region
      _
    $region5: #{tpu_custom_call.1} parent=1 // pred_fallthru
      _
    // Predicated region
    $region6: #{tpu_custom_call.1} parent=1 // pred_check
      _
    $region7: #{tpu_custom_call.1} parent=1 // pred_check_branch
      %12 = sbr.rel (0) target = $region9
    $region8: #{tpu_custom_call.1} parent=1 // pred_region
      _
    $region9: #{tpu_custom_call.1} parent=1 // pred_fallthru
      _
    // Predicated region
    $region10: #{tpu_custom_call.1} parent=1 // pred_check
      _
    $region11: #{tpu_custom_call.1} parent=1 // pred_check_branch
      %14 = sbr.rel (0) target = $region13
    $region12: #{tpu_custom_call.1} parent=1 // pred_region
      _
    $region13: #{tpu_custom_call.1} parent=1 // pred_fallthru
      _
    %v15 = vld [vmem:[%s0] sm:$0xff]
    %v16 = vld [vmem:[%s0 + $0x8] sm:$0xff]
    %v17 = vld [vmem:[%s2] sm:$0x1]
    %v19 = vlaneseq
    %v20 = vshrl.u32 %v19, 7
    %v21 = vsub.s32 0, %v20
    %v22 = vrot.slane %v17, %v21
    %v24 = vmul.f32 %v15, %v22
    %v25 = vmul.f32 %v16, %v22
    %vm26 = vcmask 261120
    %v27 = vsel %vm26, %v24, 0.0
    %28 = vadd.xlane.f32.xlu0 %v27
    %v29 = vpop.xlane.xlu0 %28
    %v30 = vsel %vm26, %v25, 0.0
    %31 = vadd.xlane.f32.xlu0 %v30
    %v32 = vpop.xlane.xlu0 %31
    %v33 = vmul.f32 %v29, 0.17677669
    %v34 = vmul.f32 %v32, 0.17677669
    %v35 = vld [vmem:[%s1] sm:$0xff]
    %v36 = vld [vmem:[%s1 + $0x8] sm:$0xff]
    %v37 = vadd.f32 %v33, %v35
    %v38 = vadd.f32 %v34, %v36
    %vm39 = vcmask 7168
    %v40 = vsel %vm39, %v37, -inf
    %v41 = vrot.slane %v40, 4
    %v42 = vmax.f32 %v40, %v41
    %v43 = vrot.slane %v42, 2
    %v44 = vmax.f32 %v42, %v43
    %v45 = vrot.slane %v44, 1
    %v46 = vmax.f32 %v44, %v45
    %v47 = vsel %vm39, %v38, -inf
    %v48 = vrot.slane %v47, 4
    %v49 = vmax.f32 %v47, %v48
    %v50 = vrot.slane %v49, 2
    %v51 = vmax.f32 %v49, %v50
    %v52 = vrot.slane %v51, 1
    %v53 = vmax.f32 %v51, %v52
    %v54 = vsub.f32 %v37, %v46
    %v55 = vsub.f32 %v38, %v53
    %v56 = vmul.f32 %v54, 1.442695
    %v57 = vpow.pop %v56
    %v58 = vmul.f32 %v55, 1.442695
    %v59 = vpow.pop %v58
    %v60 = vsel %vm39, %v57, 0.0
    %v61 = vrot.slane %v60, 4
    %v62 = vadd.f32 %v60, %v61
    %v63 = vrot.slane %v62, 2
    %v64 = vadd.f32 %v62, %v63
    %v65 = vrot.slane %v64, 1
    %v66 = vadd.f32 %v64, %v65
    %v67 = vsel %vm39, %v59, 0.0
    %v68 = vrot.slane %v67, 4
    %v69 = vadd.f32 %v67, %v68
    %v70 = vrot.slane %v69, 2
    %v71 = vadd.f32 %v69, %v70
    %v72 = vrot.slane %v71, 1
    %v73 = vadd.f32 %v71, %v72
    %v74 = vrcp.pop %v66
    %v75 = vrcp.pop %v73
    %v76 = vmul.f32 %v57, %v74
    %v77 = vmul.f32 %v59, %v75
    %79 = vset.pattern.permute.xlu0 0
    %80 = vperm.xlu0 %79, %v76
    %v81 = vpop.permute.xlu0 %80
    %84 = vset.pattern.permute.xlu0 0
    %85 = vperm.xlu0 %84, %v77
    %v86 = vpop.permute.xlu0 %85
    %v88 = vmul.f32 %v81, %v15
    %v89 = vmul.f32 %v86, %v16
    %v90 = vsel %vm26, %v88, 0.0
    %v91 = vrot.slane %v90, 4
    %v92 = vadd.f32 %v90, %v91
    %v93 = vrot.slane %v92, 2
    %v94 = vadd.f32 %v92, %v93
    %v95 = vrot.slane %v94, 1
    %v96 = vadd.f32 %v94, %v95
    %v97 = vsel %vm26, %v89, 0.0
    %v98 = vrot.slane %v97, 4
    %v99 = vadd.f32 %v97, %v98
    %v100 = vrot.slane %v99, 2
    %v101 = vadd.f32 %v99, %v100
    %v102 = vrot.slane %v101, 1
    %v103 = vadd.f32 %v101, %v102
    %vm106 = vcmask 1041409
    %v107 = vsel %vm106, %v103, %v96
    %vm109 = vcmask 254976
    %110 = vst.msk [vmem:[#allocation2] sm:$0x3] %vm109, %v107
    // Predicated region
    $region14: #{tpu_custom_call.1} parent=1 // pred_check
      _
    $region15: #{tpu_custom_call.1} parent=1 // pred_check_branch
      %112 = sbr.rel (0) target = $region17
    $region16: #{tpu_custom_call.1} parent=1 // pred_region
      %s114 = ssub.s32 32, 32
      %115 = vsyncadd [#allocation3], %s114
      %s117 = sshll.u32 [#allocation2], 4
      %s118 = int_to_ptr.vmem [resolvable:$true] %s117
      %120 = dma.vmem_to_hbm [thread:$0]  %s118, 32, %s3, [#allocation3]
    $region17: #{tpu_custom_call.1} parent=1 // pred_fallthru
      _
    // Predicated region
    $region18: #{tpu_custom_call.1} parent=1 // pred_check
      _
    $region19: #{tpu_custom_call.1} parent=1 // pred_check_branch
      %122 = sbr.rel (0) target = $region21
    $region20: #{tpu_custom_call.1} parent=1 // pred_region
      %123 = dma.done [#allocation3], 32
    $region21: #{tpu_custom_call.1} parent=1 // pred_fallthru
      _
    %124 = vsyncpa [#allocation3], 1

</llo_original>
